<compile_context>
chip_gen: v7x
topology: tpu7x:2x2x1
jax: 0.10.0
libtpu: 0.0.40
codegen_flags: <defaults>
</compile_context>

<pallas_src>
import functools

import jax
import jax.numpy as jnp
from jax.experimental import pallas as pl
from jax.experimental.pallas import tpu as pltpu


def ca_kernel(x_ref, pp_ref, s_ref, t_ref, w1_ref, b1_ref, wh_ref, bh_ref,
              ww_ref, bw_ref, out_ref, *, H, W, Nb, c_chunk):
    """One grid step: Nb batch elements, each a lane-dense (C, H*W) tile."""
    C = x_ref.shape[1]
    n_chunks = C // c_chunk

    pp = pp_ref[...]          # (HW, H+W)  pooling matrix, 1/W & 1/H folded in
    s_all = s_ref[...]        # (H, HW)    exact one-hot: S[h, i] = [i//W == h]
    t_all = t_ref[...]        # (W, HW)    exact one-hot: T[w, i] = [i%W  == w]
    w1 = w1_ref[...]          # (mip, C)   conv1 weight with BN folded
    b1 = b1_ref[...]          # (mip, 1)   conv1 bias with BN folded
    wh = wh_ref[...]          # (C, mip)
    bh = bh_ref[...]          # (C, 1)
    ww = ww_ref[...]          # (C, mip)
    bw = bw_ref[...]          # (C, 1)

    for b in range(Nb):                                   # static unroll (small)
        xb = x_ref[b]                                     # (C, HW)

        # Fused coordinate pooling: x @ P == concat([mean_w(x), mean_h(x)]).
        pooled = jnp.dot(xb, pp, preferred_element_type=jnp.float32)   # (C, H+W)

        # Shared 1x1 conv (eval-mode BN folded) + h_swish over concat axis.
        y = jnp.dot(w1, pooled, preferred_element_type=jnp.float32) + b1
        y = y * (jnp.clip(y + 3.0, 0.0, 6.0) * (1.0 / 6.0))            # (mip, H+W)

        # Per-branch 1x1 convs + sigmoid gates.
        a_h = jax.nn.sigmoid(
            jnp.dot(wh, y[:, :H], preferred_element_type=jnp.float32) + bh)  # (C, H)
        a_w = jax.nn.sigmoid(
            jnp.dot(ww, y[:, H:], preferred_element_type=jnp.float32) + bw)  # (C, W)

        # Gate broadcast (exact one-hot matmuls) + apply, chunked over channels
        # so the (c_chunk, HW) temporaries stay small (VMEM pressure on v7x).
        for ci in range(n_chunks):                        # static unroll (small)
            rows = slice(ci * c_chunk, (ci + 1) * c_chunk)
            gh = jnp.dot(a_h[rows, :], s_all,
                         preferred_element_type=jnp.float32)            # (cc, HW)
            gw = jnp.dot(a_w[rows, :], t_all,
                         preferred_element_type=jnp.float32)            # (cc, HW)
            out_ref[b, rows, :] = (xb[rows, :] * gh * gw).astype(out_ref.dtype)


def _pick_nb(N, per_elem_bytes, target_bytes=2 * 2**20):
    """Pack batch elements per grid step (few-MB blocks) but keep >=2 steps."""
    best = 1
    for nb in range(1, N + 1):
        if N % nb:
            continue
        if nb * per_elem_bytes > target_bytes:
            break
        if nb > 1 and N // nb < 2:
            continue          # keep both v7x TensorCores busy when N >= 2
        best = nb
    return best


def _pick_c_chunk(C, HW, max_gate_bytes=4 * 2**20):
    """Channel-chunk the epilogue so the two (c_chunk, HW) f32 temps stay small."""
    if 2 * C * HW * 4 <= max_gate_bytes or C % 8 != 0:
        return C
    limit = max(8, max_gate_bytes // (2 * HW * 4))
    best = 8
    for cc in range(8, C + 1, 8):
        if C % cc == 0 and cc <= limit:
            best = cc
    return best


def ca_block_forward(x_nchw, params):
    """x_nchw: (N, C, H, W) float32. Returns (N, C, H, W). Eval-mode BN."""
    N, C, H, W = x_nchw.shape
    HW = H * W
    mip = params["w1"].shape[0]
    dt = x_nchw.dtype

    # Free reshape (merge trailing contiguous dims): no transpose, no HBM pass.
    x_flat = x_nchw.reshape(N, C, HW)

    # ---- host-side constants (exact integer construction) -------------------
    i_idx = jnp.arange(HW, dtype=jnp.int32)
    S = (i_idx[None, :] // W ==
         jnp.arange(H, dtype=jnp.int32)[:, None]).astype(jnp.float32)   # (H, HW)
    T = (i_idx[None, :] % W ==
         jnp.arange(W, dtype=jnp.int32)[:, None]).astype(jnp.float32)   # (W, HW)
    # Stacked, pre-scaled pooling matrix: x @ P == concat([mean_w(x), mean_h(x)]).
    P = jnp.concatenate([S.T * (1.0 / W), T.T * (1.0 / H)], axis=1)     # (HW, H+W)

    # Fold eval-mode BatchNorm into the shared 1x1 conv.
    w1f = params["w1"] * params["bn_scale"][:, None]                        # (mip, C)
    b1f = (params["b1"] * params["bn_scale"] + params["bn_bias"])[:, None]  # (mip, 1)
    wh, bh = params["wh"], params["bh"][:, None]                            # (C, mip), (C, 1)
    ww, bw = params["ww"], params["bw"][:, None]

    # ---- block / chunk sizing ------------------------------------------------
    per_elem = C * HW * dt.itemsize
    Nb = _pick_nb(N, per_elem)
    c_chunk = _pick_c_chunk(C, HW)
    grid_steps = N // Nb
    # Note: with N == 1 only one grid step exists, so one v7x TensorCore idles;
    # batch >= 2 (or further spatial splitting) is needed to use both cores.

    block_bytes = Nb * per_elem
    const_bytes = 4 * (2 * HW * (H + W) + mip * (C + 1) + 2 * C * (mip + 1))
    epi_bytes = 4 * (3 * c_chunk * HW + C * (H + W) + 2 * C * max(H, W))
    vmem_needed = 4 * block_bytes + 2 * const_bytes + epi_bytes   # dbl-buffered blocks
    vmem_limit = int(min(max(int(vmem_needed * 1.5), 32 * 2**20), 56 * 2**20))

    flops_per_elem = 4 * C * HW * (H + W) + 4 * mip * C * (H + W) + 3 * C * HW
    cost = pl.CostEstimate(
        flops=int(N * flops_per_elem),
        transcendentals=int(N * C * (H + W)),                 # sigmoid exps
        bytes_accessed=int(2 * N * C * HW * dt.itemsize + const_bytes))

    kernel = functools.partial(ca_kernel, H=H, W=W, Nb=Nb, c_chunk=c_chunk)

    out_flat = pl.pallas_call(
        kernel,
        out_shape=jax.ShapeDtypeStruct((N, C, HW), dt),
        grid=(grid_steps,),
        in_specs=[
            pl.BlockSpec((Nb, C, HW), lambda n: (n, 0, 0)),   # x (Nb elems / step)
            pl.BlockSpec((HW, H + W), lambda n: (0, 0)),      # P  (constant block)
            pl.BlockSpec((H, HW), lambda n: (0, 0)),          # S  (constant block)
            pl.BlockSpec((W, HW), lambda n: (0, 0)),          # T  (constant block)
            pl.BlockSpec((mip, C), lambda n: (0, 0)),         # conv1 weight (BN folded)
            pl.BlockSpec((mip, 1), lambda n: (0, 0)),         # conv1 bias   (BN folded)
            pl.BlockSpec((C, mip), lambda n: (0, 0)),         # conv_h weight
            pl.BlockSpec((C, 1), lambda n: (0, 0)),           # conv_h bias
            pl.BlockSpec((C, mip), lambda n: (0, 0)),         # conv_w weight
            pl.BlockSpec((C, 1), lambda n: (0, 0)),           # conv_w bias
        ],
        out_specs=pl.BlockSpec((Nb, C, HW), lambda n: (n, 0, 0)),
        compiler_params=pltpu.CompilerParams(
            dimension_semantics=("parallel",),   # batch elements independent
            vmem_limit_bytes=vmem_limit),
        cost_estimate=cost,
    )(x_flat, P, S, T, w1f, b1f, wh, bh, ww, bw)

    return out_flat.reshape(N, C, H, W)


def make_params(key, channel, reduction=16):
    """Deterministic synthetic parameters matching ca_block.__init__ shapes."""
    mip = max(8, channel // reduction)
    ks = jax.random.split(key, 8)
    # PyTorch 1x1 conv weight (out, in, 1, 1) stored as (out, in).
    w1 = 0.3 * jax.random.normal(ks[0], (mip, channel), jnp.float32)
    b1 = 0.1 * jax.random.normal(ks[1], (mip,), jnp.float32)
    wh = 0.3 * jax.random.normal(ks[2], (channel, mip), jnp.float32)
    bh = 0.1 * jax.random.normal(ks[3], (channel,), jnp.float32)
    ww = 0.3 * jax.random.normal(ks[4], (channel, mip), jnp.float32)
    bw = 0.1 * jax.random.normal(ks[5], (channel,), jnp.float32)
    # BatchNorm (eval mode): gamma/beta + running stats.
    gamma = 1.0 + 0.1 * jax.random.normal(ks[6], (mip,), jnp.float32)
    beta = 0.1 * jax.random.normal(ks[7], (mip,), jnp.float32)
    running_mean = jnp.linspace(-0.2, 0.2, mip, dtype=jnp.float32)
    running_var = jnp.linspace(0.8, 1.2, mip, dtype=jnp.float32)
    eps = 1e-5
    bn_scale = gamma / jnp.sqrt(running_var + eps)
    bn_bias = beta - running_mean * bn_scale
    return {"w1": w1, "b1": b1, "bn_scale": bn_scale, "bn_bias": bn_bias,
            "wh": wh, "bh": bh, "ww": ww, "bw": bw}


def ca_block_reference(x, p):
    """Pure-JAX NCHW reference mirroring the PyTorch forward (eval-mode BN)."""
    hi = jax.lax.Precision.HIGHEST
    n, c, h, w = x.shape
    x_h = jnp.mean(x, axis=3)                                    # (N, C, H)
    x_w = jnp.mean(x, axis=2)                                    # (N, C, W)
    y = jnp.concatenate([x_h, x_w], axis=2)                      # (N, C, H+W)
    y = jnp.einsum("mc,ncs->nms", p["w1"], y, precision=hi) + p["b1"][None, :, None]
    y = y * p["bn_scale"][None, :, None] + p["bn_bias"][None, :, None]
    y = y * (jnp.clip(y + 3.0, 0.0, 6.0) / 6.0)                  # h_swish
    yh, yw = y[:, :, :h], y[:, :, h:]
    a_h = jax.nn.sigmoid(jnp.einsum("cm,nms->ncs", p["wh"], yh, precision=hi)
                         + p["bh"][None, :, None])               # (N, C, H)
    a_w = jax.nn.sigmoid(jnp.einsum("cm,nms->ncs", p["ww"], yw, precision=hi)
                         + p["bw"][None, :, None])               # (N, C, W)
    return x * a_h[:, :, :, None] * a_w[:, :, None, :]


if __name__ == "__main__":
    key = jax.random.PRNGKey(0)
    fwd = jax.jit(ca_block_forward)

    def check(N, C, H, W, reduction=16):
        kx, kp = jax.random.split(jax.random.fold_in(key, N * 1000003 + C * H * W))
        x = jax.random.normal(kx, (N, C, H, W), jnp.float32)
        params = make_params(kp, channel=C, reduction=reduction)
        out = jax.block_until_ready(fwd(x, params))
        ref = jax.block_until_ready(ca_block_reference(x, params))
        assert out.shape == (N, C, H, W)
        err = jnp.max(jnp.abs(out - ref))
        assert jnp.allclose(out, ref, atol=1e-4, rtol=1e-4), f"max abs err {err}"

    # Primary small case (Nb=1 per grid step, un-chunked epilogue, 2 grid steps).
    check(2, 4, 16, 16)
    # Exercises multi-batch packing (Nb=4 per grid step) while keeping 2 steps.
    check(8, 4, 16, 16)
    # Exercises the channel-chunked epilogue (2 chunks of 128 channels).
    check(2, 256, 56, 56)

    print("KERNEL_OK")
</pallas_src>

<mosaic_0001>
module attributes {stable_mosaic.version = 11 : i64} {
  func.func @ca_kernel(%arg0: i32, %arg1: memref<1x4x256xf32, #tpu.memory_space<vmem>>, %arg2: memref<256x32xf32, #tpu.memory_space<vmem>>, %arg3: memref<16x256xf32, #tpu.memory_space<vmem>>, %arg4: memref<16x256xf32, #tpu.memory_space<vmem>>, %arg5: memref<8x4xf32, #tpu.memory_space<vmem>>, %arg6: memref<8x1xf32, #tpu.memory_space<vmem>>, %arg7: memref<4x8xf32, #tpu.memory_space<vmem>>, %arg8: memref<4x1xf32, #tpu.memory_space<vmem>>, %arg9: memref<4x8xf32, #tpu.memory_space<vmem>>, %arg10: memref<4x1xf32, #tpu.memory_space<vmem>>, %arg11: memref<1x4x256xf32, #tpu.memory_space<vmem>>) attributes {dimension_semantics = [#tpu.dimension_semantics<parallel>], iteration_bounds = array<i64: 2>, scalar_prefetch = 0 : i64, scratch_operands = 0 : i64, tpu.core_type = #tpu.core_type<tc>, window_params = [{transform_indices = @transform_0, window_bounds = array<i64: 1, 4, 256>}, {pipeline_mode = #tpu.pipeline_mode<synchronous>, transform_indices = @transform_1, window_bounds = array<i64: 256, 32>}, {pipeline_mode = #tpu.pipeline_mode<synchronous>, transform_indices = @transform_2, window_bounds = array<i64: 16, 256>}, {pipeline_mode = #tpu.pipeline_mode<synchronous>, transform_indices = @transform_3, window_bounds = array<i64: 16, 256>}, {pipeline_mode = #tpu.pipeline_mode<synchronous>, transform_indices = @transform_4, window_bounds = array<i64: 8, 4>}, {pipeline_mode = #tpu.pipeline_mode<synchronous>, transform_indices = @transform_5, window_bounds = array<i64: 8, 1>}, {pipeline_mode = #tpu.pipeline_mode<synchronous>, transform_indices = @transform_6, window_bounds = array<i64: 4, 8>}, {pipeline_mode = #tpu.pipeline_mode<synchronous>, transform_indices = @transform_7, window_bounds = array<i64: 4, 1>}, {pipeline_mode = #tpu.pipeline_mode<synchronous>, transform_indices = @transform_8, window_bounds = array<i64: 4, 8>}, {pipeline_mode = #tpu.pipeline_mode<synchronous>, transform_indices = @transform_9, window_bounds = array<i64: 4, 1>}, {transform_indices = @transform_10, window_bounds = array<i64: 1, 4, 256>}]} {
    %c0 = arith.constant 0 : index
    %c0_0 = arith.constant 0 : index
    %0 = vector.load %arg2[%c0, %c0_0] : memref<256x32xf32, #tpu.memory_space<vmem>>, vector<256x32xf32>
    %c0_1 = arith.constant 0 : index
    %c0_2 = arith.constant 0 : index
    %1 = vector.load %arg3[%c0_1, %c0_2] : memref<16x256xf32, #tpu.memory_space<vmem>>, vector<16x256xf32>
    %c0_3 = arith.constant 0 : index
    %c0_4 = arith.constant 0 : index
    %2 = vector.load %arg4[%c0_3, %c0_4] : memref<16x256xf32, #tpu.memory_space<vmem>>, vector<16x256xf32>
    %c0_5 = arith.constant 0 : index
    %c0_6 = arith.constant 0 : index
    %3 = vector.load %arg5[%c0_5, %c0_6] : memref<8x4xf32, #tpu.memory_space<vmem>>, vector<8x4xf32>
    %c0_7 = arith.constant 0 : index
    %c0_8 = arith.constant 0 : index
    %4 = vector.load %arg6[%c0_7, %c0_8] : memref<8x1xf32, #tpu.memory_space<vmem>>, vector<8x1xf32>
    %c0_9 = arith.constant 0 : index
    %c0_10 = arith.constant 0 : index
    %5 = vector.load %arg7[%c0_9, %c0_10] : memref<4x8xf32, #tpu.memory_space<vmem>>, vector<4x8xf32>
    %c0_11 = arith.constant 0 : index
    %c0_12 = arith.constant 0 : index
    %6 = vector.load %arg8[%c0_11, %c0_12] : memref<4x1xf32, #tpu.memory_space<vmem>>, vector<4x1xf32>
    %c0_13 = arith.constant 0 : index
    %c0_14 = arith.constant 0 : index
    %7 = vector.load %arg9[%c0_13, %c0_14] : memref<4x8xf32, #tpu.memory_space<vmem>>, vector<4x8xf32>
    %c0_15 = arith.constant 0 : index
    %c0_16 = arith.constant 0 : index
    %8 = vector.load %arg10[%c0_15, %c0_16] : memref<4x1xf32, #tpu.memory_space<vmem>>, vector<4x1xf32>
    %c0_17 = arith.constant 0 : index
    %c0_18 = arith.constant 0 : index
    %c0_19 = arith.constant 0 : index
    %9 = vector.load %arg1[%c0_17, %c0_18, %c0_19] : memref<1x4x256xf32, #tpu.memory_space<vmem>>, vector<1x4x256xf32>
    %10 = vector.shape_cast %9 : vector<1x4x256xf32> to vector<4x256xf32>
    %cst = arith.constant dense<0.000000e+00> : vector<4x32xf32>
    %11 = tpu.matmul %10, %0, %cst {dimension_numbers = #tpu.dot_dimension_numbers<[1], [0], [0], [1], [0, 0, 1, 1], [], []>} : vector<4x256xf32>, vector<256x32xf32>, vector<4x32xf32> -> vector<4x32xf32>
    %cst_20 = arith.constant dense<0.000000e+00> : vector<8x32xf32>
    %12 = tpu.matmul %3, %11, %cst_20 {dimension_numbers = #tpu.dot_dimension_numbers<[1], [0], [0], [1], [0, 0, 1, 1], [], []>} : vector<8x4xf32>, vector<4x32xf32>, vector<8x32xf32> -> vector<8x32xf32>
    %13 = vector.broadcast %4 : vector<8x1xf32> to vector<8x32xf32>
    %14 = arith.addf %12, %13 : vector<8x32xf32>
    %cst_21 = arith.constant 3.000000e+00 : f32
    %15 = vector.broadcast %cst_21 : f32 to vector<8x32xf32>
    %16 = arith.addf %14, %15 : vector<8x32xf32>
    %cst_22 = arith.constant 0.000000e+00 : f32
    %cst_23 = arith.constant 6.000000e+00 : f32
    %17 = vector.broadcast %cst_22 : f32 to vector<8x32xf32>
    %18 = arith.maximumf %17, %16 : vector<8x32xf32>
    %19 = vector.broadcast %cst_23 : f32 to vector<8x32xf32>
    %20 = arith.minimumf %19, %18 : vector<8x32xf32>
    %cst_24 = arith.constant 0.166666672 : f32
    %21 = vector.broadcast %cst_24 : f32 to vector<8x32xf32>
    %22 = arith.mulf %20, %21 : vector<8x32xf32>
    %23 = arith.mulf %14, %22 : vector<8x32xf32>
    %24 = vector.extract_strided_slice %23 {offsets = [0, 0], sizes = [8, 16], strides = [1, 1]} : vector<8x32xf32> to vector<8x16xf32>
    %cst_25 = arith.constant dense<0.000000e+00> : vector<4x16xf32>
    %25 = tpu.matmul %5, %24, %cst_25 {dimension_numbers = #tpu.dot_dimension_numbers<[1], [0], [0], [1], [0, 0, 1, 1], [], []>} : vector<4x8xf32>, vector<8x16xf32>, vector<4x16xf32> -> vector<4x16xf32>
    %26 = vector.broadcast %6 : vector<4x1xf32> to vector<4x16xf32>
    %27 = arith.addf %25, %26 : vector<4x16xf32>
    %28 = arith.negf %27 : vector<4x16xf32>
    %29 = math.exp %28 : vector<4x16xf32>
    %cst_26 = arith.constant 1.000000e+00 : f32
    %30 = vector.broadcast %cst_26 : f32 to vector<4x16xf32>
    %31 = arith.addf %30, %29 : vector<4x16xf32>
    %32 = arith.divf %30, %31 : vector<4x16xf32>
    %33 = vector.extract_strided_slice %23 {offsets = [0, 16], sizes = [8, 16], strides = [1, 1]} : vector<8x32xf32> to vector<8x16xf32>
    %cst_27 = arith.constant dense<0.000000e+00> : vector<4x16xf32>
    %34 = tpu.matmul %7, %33, %cst_27 {dimension_numbers = #tpu.dot_dimension_numbers<[1], [0], [0], [1], [0, 0, 1, 1], [], []>} : vector<4x8xf32>, vector<8x16xf32>, vector<4x16xf32> -> vector<4x16xf32>
    %35 = vector.broadcast %8 : vector<4x1xf32> to vector<4x16xf32>
    %36 = arith.addf %34, %35 : vector<4x16xf32>
    %37 = arith.negf %36 : vector<4x16xf32>
    %38 = math.exp %37 : vector<4x16xf32>
    %cst_28 = arith.constant 1.000000e+00 : f32
    %39 = vector.broadcast %cst_28 : f32 to vector<4x16xf32>
    %40 = arith.addf %39, %38 : vector<4x16xf32>
    %41 = arith.divf %39, %40 : vector<4x16xf32>
    %cst_29 = arith.constant dense<0.000000e+00> : vector<4x256xf32>
    %42 = tpu.matmul %32, %1, %cst_29 {dimension_numbers = #tpu.dot_dimension_numbers<[1], [0], [0], [1], [0, 0, 1, 1], [], []>} : vector<4x16xf32>, vector<16x256xf32>, vector<4x256xf32> -> vector<4x256xf32>
    %cst_30 = arith.constant dense<0.000000e+00> : vector<4x256xf32>
    %43 = tpu.matmul %41, %2, %cst_30 {dimension_numbers = #tpu.dot_dimension_numbers<[1], [0], [0], [1], [0, 0, 1, 1], [], []>} : vector<4x16xf32>, vector<16x256xf32>, vector<4x256xf32> -> vector<4x256xf32>
    %44 = arith.mulf %10, %42 : vector<4x256xf32>
    %45 = arith.mulf %44, %43 : vector<4x256xf32>
    %c0_31 = arith.constant 0 : index
    %c0_32 = arith.constant 0 : index
    %c0_33 = arith.constant 0 : index
    %46 = vector.load %arg11[%c0_31, %c0_32, %c0_33] : memref<1x4x256xf32, #tpu.memory_space<vmem>>, vector<1x4x256xf32>
    %47 = vector.shape_cast %46 : vector<1x4x256xf32> to vector<4x256xf32>
    %48 = vector.shape_cast %45 : vector<4x256xf32> to vector<1x4x256xf32>
    tpu.vector_store %arg11[%c0_31, %c0_32, %c0_33], %48 {strides = array<i32>} : memref<1x4x256xf32, #tpu.memory_space<vmem>>, vector<1x4x256xf32>,
    return
  }
  func.func @transform_0(%arg0: i32) -> (i32, i32, i32) {
    %c0_i32 = arith.constant 0 : i32
    %c0_i32_0 = arith.constant 0 : i32
    %c0_i32_1 = arith.constant 0 : i32
    return %arg0, %c0_i32, %c0_i32_0 : i32, i32, i32
  }
  func.func @transform_1(%arg0: i32) -> (i32, i32) {
    %c0_i32 = arith.constant 0 : i32
    %c0_i32_0 = arith.constant 0 : i32
    %c0_i32_1 = arith.constant 0 : i32
    return %c0_i32, %c0_i32_0 : i32, i32
  }
  func.func @transform_2(%arg0: i32) -> (i32, i32) {
    %c0_i32 = arith.constant 0 : i32
    %c0_i32_0 = arith.constant 0 : i32
    %c0_i32_1 = arith.constant 0 : i32
    return %c0_i32, %c0_i32_0 : i32, i32
  }
  func.func @transform_3(%arg0: i32) -> (i32, i32) {
    %c0_i32 = arith.constant 0 : i32
    %c0_i32_0 = arith.constant 0 : i32
    %c0_i32_1 = arith.constant 0 : i32
    return %c0_i32, %c0_i32_0 : i32, i32
  }
  func.func @transform_4(%arg0: i32) -> (i32, i32) {
    %c0_i32 = arith.constant 0 : i32
    %c0_i32_0 = arith.constant 0 : i32
    %c0_i32_1 = arith.constant 0 : i32
    return %c0_i32, %c0_i32_0 : i32, i32
  }
  func.func @transform_5(%arg0: i32) -> (i32, i32) {
    %c0_i32 = arith.constant 0 : i32
    %c0_i32_0 = arith.constant 0 : i32
    %c0_i32_1 = arith.constant 0 : i32
    return %c0_i32, %c0_i32_0 : i32, i32
  }
  func.func @transform_6(%arg0: i32) -> (i32, i32) {
    %c0_i32 = arith.constant 0 : i32
    %c0_i32_0 = arith.constant 0 : i32
    %c0_i32_1 = arith.constant 0 : i32
    return %c0_i32, %c0_i32_0 : i32, i32
  }
  func.func @transform_7(%arg0: i32) -> (i32, i32) {
    %c0_i32 = arith.constant 0 : i32
    %c0_i32_0 = arith.constant 0 : i32
    %c0_i32_1 = arith.constant 0 : i32
    return %c0_i32, %c0_i32_0 : i32, i32
  }
  func.func @transform_8(%arg0: i32) -> (i32, i32) {
    %c0_i32 = arith.constant 0 : i32
    %c0_i32_0 = arith.constant 0 : i32
    %c0_i32_1 = arith.constant 0 : i32
    return %c0_i32, %c0_i32_0 : i32, i32
  }
  func.func @transform_9(%arg0: i32) -> (i32, i32) {
    %c0_i32 = arith.constant 0 : i32
    %c0_i32_0 = arith.constant 0 : i32
    %c0_i32_1 = arith.constant 0 : i32
    return %c0_i32, %c0_i32_0 : i32, i32
  }
  func.func @transform_10(%arg0: i32) -> (i32, i32, i32) {
    %c0_i32 = arith.constant 0 : i32
    %c0_i32_0 = arith.constant 0 : i32
    %c0_i32_1 = arith.constant 0 : i32
    return %arg0, %c0_i32, %c0_i32_0 : i32, i32, i32
  }
}

</mosaic_0001>

<llo_original>
// kernel: ca_block_forward.1
$region0: #{ca_block_forward.1}
  #allocation0 [shape = 'u32[]', space=smem, size = 0x4, offset = 0x4, fixed_abs, tag = 'smem constant byte address 0x4 - core index']
  #allocation1 [shape = 'u32[144,128]{1,0:T(1,128)}', space=vmem, size = 0x12000, scoped, tag = 'internal scratch']
  %s0 = inlined_call_operand.vmem [shape: f32[2,4,256], index: 0, kind: input, shape index: {}]
  %s1 = inlined_call_operand.vmem [shape: f32[256,32], index: 1, kind: input, shape index: {}]
  %s2 = inlined_call_operand.vmem [shape: f32[16,256], index: 2, kind: input, shape index: {}]
  %s3 = inlined_call_operand.vmem [shape: f32[16,256], index: 3, kind: input, shape index: {}]
  %s4 = inlined_call_operand.vmem [shape: f32[8,4], index: 4, kind: input, shape index: {}]
  %s5 = inlined_call_operand.vmem [shape: f32[8,1], index: 5, kind: input, shape index: {}]
  %s6 = inlined_call_operand.vmem [shape: f32[4,8], index: 6, kind: input, shape index: {}]
  %s7 = inlined_call_operand.vmem [shape: f32[4,1], index: 7, kind: input, shape index: {}]
  %s8 = inlined_call_operand.vmem [shape: f32[4,8], index: 8, kind: input, shape index: {}]
  %s9 = inlined_call_operand.vmem [shape: f32[4,1], index: 9, kind: input, shape index: {}]
  %s10 = inlined_call_operand.vmem [shape: f32[2,4,256], index: 10, kind: output, shape index: {}]
  %s11 = sld [smem:[#allocation0]]
  $region73: #{ca_block_forward.1} parent=0
    _
  %s13 = ssub.s32 1, %s11
  %s14 = scalar_select 0, %s13, %s11
  loop: start=0, step=1, limit=4
  $region2: #{ca_block_forward.1} parent=0 // loop_pre_header
    _
  $region3: #{ca_block_forward.1} parent=0 // loop_header
    %s16 = sphi 0, %s20
    %p17 = scmp.ge.s32.totalorder %s16, 4
    %s26 = sphi 0, %s28
    %s29 = sphi 0, %s26
    %s30 = sphi 0, %s29
    %s46 = sphi 0, %s30
    %s50 = sphi 0, %s50
    %s52 = sphi 0, %s50
    %s53 = sphi 0, %s52
    %s67 = sphi 0, %s53
    %s71 = sphi 0, %s71
    %s73 = sphi 0, %s71
    %s74 = sphi 0, %s73
    %s88 = sphi 0, %s74
    %s92 = sphi 0, %s92
    %s94 = sphi 0, %s92
    %s95 = sphi 0, %s94
    %s109 = sphi 0, %s95
    %s113 = sphi 0, %s113
    %s115 = sphi 0, %s113
    %s116 = sphi 0, %s115
    %s130 = sphi 0, %s116
    %s134 = sphi 0, %s134
    %s136 = sphi 0, %s134
    %s137 = sphi 0, %s136
    %s151 = sphi 0, %s137
    %s155 = sphi 0, %s155
    %s157 = sphi 0, %s155
    %s158 = sphi 0, %s157
    %s172 = sphi 0, %s158
    %s176 = sphi 0, %s176
    %s178 = sphi 0, %s176
    %s179 = sphi 0, %s178
    %s193 = sphi 0, %s179
    %s197 = sphi 0, %s197
    %s199 = sphi 0, %s197
    %s200 = sphi 0, %s199
    %s214 = sphi 0, %s200
    %s218 = sphi 0, %s218
    %s220 = sphi 0, %s218
    %s221 = sphi 0, %s220
    %s235 = sphi 0, %s221
    %s241 = sphi 0, %s243
    %s244 = sphi 0, %s241
    %s245 = sphi 0, %s244
    %s261 = sphi 0, %s245
  $region4: #{ca_block_forward.1} parent=0 // loop_header_branch
    %19 = sbr.rel (%p17) target = $region8
  $region5: #{ca_block_forward.1} parent=0 // loop_body
    %s21 = ssub.s32 %s16, 1
    %s22 = ssub.s32 %s16, 2
    %s23 = sadd.s32 %s16, 1
    %s24 = ssub.s32 %s16, %s23
    %p25 = scmp.eq.s32.totalorder %s24, 0
    %s27 = sadd.s32 %s26, 1
    %s28 = scalar_select %p25, %s26, %s27
    %p31 = pneg %p25
    %p32 = scmp.eq.s32.totalorder %s16, 1
    %p33 = por %p31, %p32
    %p34 = scmp.ne.s32.totalorder %s26, %s29
    %p35 = scmp.eq.s32.totalorder %s16, 0
    %p36 = por %p34, %p35
    %p37 = scmp.ne.s32.totalorder %s26, %s29
    %p38 = scmp.eq.s32.totalorder %s21, 1
    %p39 = por %p37, %p38
    %p40 = scmp.ne.s32.totalorder %s29, %s30
    %p41 = scmp.eq.s32.totalorder %s21, 0
    %p42 = por %p40, %p41
    %p43 = scmp.ne.s32.totalorder %s29, %s30
    %p44 = scmp.eq.s32.totalorder %s22, 1
    %p45 = por %p43, %p44
    %p47 = scmp.ne.s32.totalorder %s30, %s46
    %p48 = scmp.eq.s32.totalorder %s22, 0
    %p49 = por %p47, %p48
    %s51 = sadd.s32 %s50, 1
    %p54 = scmp.eq.s32.totalorder %s16, 1
    %p55 = scmp.ne.s32.totalorder %s50, %s52
    %p56 = scmp.eq.s32.totalorder %s16, 0
    %p57 = por %p55, %p56
    %p58 = scmp.ne.s32.totalorder %s50, %s52
    %p59 = scmp.eq.s32.totalorder %s21, 1
    %p60 = por %p58, %p59
    %p61 = scmp.ne.s32.totalorder %s52, %s53
    %p62 = scmp.eq.s32.totalorder %s21, 0
    %p63 = por %p61, %p62
    %p64 = scmp.ne.s32.totalorder %s52, %s53
    %p65 = scmp.eq.s32.totalorder %s22, 1
    %p66 = por %p64, %p65
    %p68 = scmp.ne.s32.totalorder %s53, %s67
    %p69 = scmp.eq.s32.totalorder %s22, 0
    %p70 = por %p68, %p69
    %s72 = sadd.s32 %s71, 1
    %p75 = scmp.eq.s32.totalorder %s16, 1
    %p76 = scmp.ne.s32.totalorder %s71, %s73
    %p77 = scmp.eq.s32.totalorder %s16, 0
    %p78 = por %p76, %p77
    %p79 = scmp.ne.s32.totalorder %s71, %s73
    %p80 = scmp.eq.s32.totalorder %s21, 1
    %p81 = por %p79, %p80
    %p82 = scmp.ne.s32.totalorder %s73, %s74
    %p83 = scmp.eq.s32.totalorder %s21, 0
    %p84 = por %p82, %p83
    %p85 = scmp.ne.s32.totalorder %s73, %s74
    %p86 = scmp.eq.s32.totalorder %s22, 1
    %p87 = por %p85, %p86
    %p89 = scmp.ne.s32.totalorder %s74, %s88
    %p90 = scmp.eq.s32.totalorder %s22, 0
    %p91 = por %p89, %p90
    %s93 = sadd.s32 %s92, 1
    %p96 = scmp.eq.s32.totalorder %s16, 1
    %p97 = scmp.ne.s32.totalorder %s92, %s94
    %p98 = scmp.eq.s32.totalorder %s16, 0
    %p99 = por %p97, %p98
    %p100 = scmp.ne.s32.totalorder %s92, %s94
    %p101 = scmp.eq.s32.totalorder %s21, 1
    %p102 = por %p100, %p101
    %p103 = scmp.ne.s32.totalorder %s94, %s95
    %p104 = scmp.eq.s32.totalorder %s21, 0
    %p105 = por %p103, %p104
    %p106 = scmp.ne.s32.totalorder %s94, %s95
    %p107 = scmp.eq.s32.totalorder %s22, 1
    %p108 = por %p106, %p107
    %p110 = scmp.ne.s32.totalorder %s95, %s109
    %p111 = scmp.eq.s32.totalorder %s22, 0
    %p112 = por %p110, %p111
    %s114 = sadd.s32 %s113, 1
    %p117 = scmp.eq.s32.totalorder %s16, 1
    %p118 = scmp.ne.s32.totalorder %s113, %s115
    %p119 = scmp.eq.s32.totalorder %s16, 0
    %p120 = por %p118, %p119
    %p121 = scmp.ne.s32.totalorder %s113, %s115
    %p122 = scmp.eq.s32.totalorder %s21, 1
    %p123 = por %p121, %p122
    %p124 = scmp.ne.s32.totalorder %s115, %s116
    %p125 = scmp.eq.s32.totalorder %s21, 0
    %p126 = por %p124, %p125
    %p127 = scmp.ne.s32.totalorder %s115, %s116
    %p128 = scmp.eq.s32.totalorder %s22, 1
    %p129 = por %p127, %p128
    %p131 = scmp.ne.s32.totalorder %s116, %s130
    %p132 = scmp.eq.s32.totalorder %s22, 0
    %p133 = por %p131, %p132
    %s135 = sadd.s32 %s134, 1
    %p138 = scmp.eq.s32.totalorder %s16, 1
    %p139 = scmp.ne.s32.totalorder %s134, %s136
    %p140 = scmp.eq.s32.totalorder %s16, 0
    %p141 = por %p139, %p140
    %p142 = scmp.ne.s32.totalorder %s134, %s136
    %p143 = scmp.eq.s32.totalorder %s21, 1
    %p144 = por %p142, %p143
    %p145 = scmp.ne.s32.totalorder %s136, %s137
    %p146 = scmp.eq.s32.totalorder %s21, 0
    %p147 = por %p145, %p146
    %p148 = scmp.ne.s32.totalorder %s136, %s137
    %p149 = scmp.eq.s32.totalorder %s22, 1
    %p150 = por %p148, %p149
    %p152 = scmp.ne.s32.totalorder %s137, %s151
    %p153 = scmp.eq.s32.totalorder %s22, 0
    %p154 = por %p152, %p153
    %s156 = sadd.s32 %s155, 1
    %p159 = scmp.eq.s32.totalorder %s16, 1
    %p160 = scmp.ne.s32.totalorder %s155, %s157
    %p161 = scmp.eq.s32.totalorder %s16, 0
    %p162 = por %p160, %p161
    %p163 = scmp.ne.s32.totalorder %s155, %s157
    %p164 = scmp.eq.s32.totalorder %s21, 1
    %p165 = por %p163, %p164
    %p166 = scmp.ne.s32.totalorder %s157, %s158
    %p167 = scmp.eq.s32.totalorder %s21, 0
    %p168 = por %p166, %p167
    %p169 = scmp.ne.s32.totalorder %s157, %s158
    %p170 = scmp.eq.s32.totalorder %s22, 1
    %p171 = por %p169, %p170
    %p173 = scmp.ne.s32.totalorder %s158, %s172
    %p174 = scmp.eq.s32.totalorder %s22, 0
    %p175 = por %p173, %p174
    %s177 = sadd.s32 %s176, 1
    %p180 = scmp.eq.s32.totalorder %s16, 1
    %p181 = scmp.ne.s32.totalorder %s176, %s178
    %p182 = scmp.eq.s32.totalorder %s16, 0
    %p183 = por %p181, %p182
    %p184 = scmp.ne.s32.totalorder %s176, %s178
    %p185 = scmp.eq.s32.totalorder %s21, 1
    %p186 = por %p184, %p185
    %p187 = scmp.ne.s32.totalorder %s178, %s179
    %p188 = scmp.eq.s32.totalorder %s21, 0
    %p189 = por %p187, %p188
    %p190 = scmp.ne.s32.totalorder %s178, %s179
    %p191 = scmp.eq.s32.totalorder %s22, 1
    %p192 = por %p190, %p191
    %p194 = scmp.ne.s32.totalorder %s179, %s193
    %p195 = scmp.eq.s32.totalorder %s22, 0
    %p196 = por %p194, %p195
    %s198 = sadd.s32 %s197, 1
    %p201 = scmp.eq.s32.totalorder %s16, 1
    %p202 = scmp.ne.s32.totalorder %s197, %s199
    %p203 = scmp.eq.s32.totalorder %s16, 0
    %p204 = por %p202, %p203
    %p205 = scmp.ne.s32.totalorder %s197, %s199
    %p206 = scmp.eq.s32.totalorder %s21, 1
    %p207 = por %p205, %p206
    %p208 = scmp.ne.s32.totalorder %s199, %s200
    %p209 = scmp.eq.s32.totalorder %s21, 0
    %p210 = por %p208, %p209
    %p211 = scmp.ne.s32.totalorder %s199, %s200
    %p212 = scmp.eq.s32.totalorder %s22, 1
    %p213 = por %p211, %p212
    %p215 = scmp.ne.s32.totalorder %s200, %s214
    %p216 = scmp.eq.s32.totalorder %s22, 0
    %p217 = por %p215, %p216
    %s219 = sadd.s32 %s218, 1
    %p222 = scmp.eq.s32.totalorder %s16, 1
    %p223 = scmp.ne.s32.totalorder %s218, %s220
    %p224 = scmp.eq.s32.totalorder %s16, 0
    %p225 = por %p223, %p224
    %p226 = scmp.ne.s32.totalorder %s218, %s220
    %p227 = scmp.eq.s32.totalorder %s21, 1
    %p228 = por %p226, %p227
    %p229 = scmp.ne.s32.totalorder %s220, %s221
    %p230 = scmp.eq.s32.totalorder %s21, 0
    %p231 = por %p229, %p230
    %p232 = scmp.ne.s32.totalorder %s220, %s221
    %p233 = scmp.eq.s32.totalorder %s22, 1
    %p234 = por %p232, %p233
    %p236 = scmp.ne.s32.totalorder %s221, %s235
    %p237 = scmp.eq.s32.totalorder %s22, 0
    %p238 = por %p236, %p237
    %s239 = ssub.s32 %s16, %s23
    %p240 = scmp.eq.s32.totalorder %s239, 0
    %s242 = sadd.s32 %s241, 1
    %s243 = scalar_select %p240, %s241, %s242
    %p246 = pneg %p240
    %p247 = scmp.eq.s32.totalorder %s16, 1
    %p248 = por %p246, %p247
    %p249 = scmp.ne.s32.totalorder %s241, %s244
    %p250 = scmp.eq.s32.totalorder %s16, 0
    %p251 = por %p249, %p250
    %p252 = scmp.ne.s32.totalorder %s241, %s244
    %p253 = scmp.eq.s32.totalorder %s21, 1
    %p254 = por %p252, %p253
    %p255 = scmp.ne.s32.totalorder %s244, %s245
    %p256 = scmp.eq.s32.totalorder %s21, 0
    %p257 = por %p255, %p256
    %p258 = scmp.ne.s32.totalorder %s244, %s245
    %p259 = scmp.eq.s32.totalorder %s22, 1
    %p260 = por %p258, %p259
    %p262 = scmp.ne.s32.totalorder %s245, %s261
    %p263 = scmp.eq.s32.totalorder %s22, 0
    %p264 = por %p262, %p263
    %p265 = scmp.le.s32.totalorder 1, %s16
    %p266 = scmp.lt.s32.totalorder %s16, 3
    %p267 = pnand %p265, %p266
    %p268 = pneg %p267
    // Predicated region
    $region9: #{ca_block_forward.1} parent=5 // pred_check
      _
    $region10: #{ca_block_forward.1} parent=5 // pred_check_branch
      %270 = sbr.rel (%p267) target = $region12
    $region11: #{ca_block_forward.1} parent=5 // pred_region
      %s271 = ssub.s32 %s16, 1
      // Predicated region
      $region13: #{ca_block_forward.1} parent=11 // pred_check
        %p272 = pneg %p63
      $region14: #{ca_block_forward.1} parent=11 // pred_check_branch
        %274 = sbr.rel (%p272) target = $region16
      $region15: #{ca_block_forward.1} parent=11 // pred_region
        _
      $region16: #{ca_block_forward.1} parent=11 // pred_fallthru
        _
      // Predicated region
      $region17: #{ca_block_forward.1} parent=11 // pred_check
        %p275 = pneg %p84
      $region18: #{ca_block_forward.1} parent=11 // pred_check_branch
        %277 = sbr.rel (%p275) target = $region20
      $region19: #{ca_block_forward.1} parent=11 // pred_region
        _
      $region20: #{ca_block_forward.1} parent=11 // pred_fallthru
        _
      // Predicated region
      $region21: #{ca_block_forward.1} parent=11 // pred_check
        %p278 = pneg %p105
      $region22: #{ca_block_forward.1} parent=11 // pred_check_branch
        %280 = sbr.rel (%p278) target = $region24
      $region23: #{ca_block_forward.1} parent=11 // pred_region
        _
      $region24: #{ca_block_forward.1} parent=11 // pred_fallthru
        _
      // Predicated region
      $region25: #{ca_block_forward.1} parent=11 // pred_check
        %p281 = pneg %p126
      $region26: #{ca_block_forward.1} parent=11 // pred_check_branch
        %283 = sbr.rel (%p281) target = $region28
      $region27: #{ca_block_forward.1} parent=11 // pred_region
        _
      $region28: #{ca_block_forward.1} parent=11 // pred_fallthru
        _
      // Predicated region
      $region29: #{ca_block_forward.1} parent=11 // pred_check
        %p284 = pneg %p147
      $region30: #{ca_block_forward.1} parent=11 // pred_check_branch
        %286 = sbr.rel (%p284) target = $region32
      $region31: #{ca_block_forward.1} parent=11 // pred_region
        _
      $region32: #{ca_block_forward.1} parent=11 // pred_fallthru
        _
      // Predicated region
      $region33: #{ca_block_forward.1} parent=11 // pred_check
        %p287 = pneg %p168
      $region34: #{ca_block_forward.1} parent=11 // pred_check_branch
        %289 = sbr.rel (%p287) target = $region36
      $region35: #{ca_block_forward.1} parent=11 // pred_region
        _
      $region36: #{ca_block_forward.1} parent=11 // pred_fallthru
        _
      // Predicated region
      $region37: #{ca_block_forward.1} parent=11 // pred_check
        %p290 = pneg %p189
      $region38: #{ca_block_forward.1} parent=11 // pred_check_branch
        %292 = sbr.rel (%p290) target = $region40
      $region39: #{ca_block_forward.1} parent=11 // pred_region
        _
      $region40: #{ca_block_forward.1} parent=11 // pred_fallthru
        _
      // Predicated region
      $region41: #{ca_block_forward.1} parent=11 // pred_check
        %p293 = pneg %p210
      $region42: #{ca_block_forward.1} parent=11 // pred_check_branch
        %295 = sbr.rel (%p293) target = $region44
      $region43: #{ca_block_forward.1} parent=11 // pred_region
        _
      $region44: #{ca_block_forward.1} parent=11 // pred_fallthru
        _
      // Predicated region
      $region45: #{ca_block_forward.1} parent=11 // pred_check
        %p296 = pneg %p231
      $region46: #{ca_block_forward.1} parent=11 // pred_check_branch
        %298 = sbr.rel (%p296) target = $region48
      $region47: #{ca_block_forward.1} parent=11 // pred_region
        _
      $region48: #{ca_block_forward.1} parent=11 // pred_fallthru
        _
    $region12: #{ca_block_forward.1} parent=5 // pred_fallthru
      _
    %p299 = scmp.lt.s32.totalorder %s16, 2
    // Predicated region
    $region49: #{ca_block_forward.1} parent=5 // pred_check
      %p300 = pneg %p299
    $region50: #{ca_block_forward.1} parent=5 // pred_check_branch
      %302 = sbr.rel (%p300) target = $region52
    $region51: #{ca_block_forward.1} parent=5 // pred_region
      // Predicated region
      $region53: #{ca_block_forward.1} parent=51 // pred_check
        %p303 = pneg %p36
      $region54: #{ca_block_forward.1} parent=51 // pred_check_branch
        %305 = sbr.rel (%p303) target = $region56
      $region55: #{ca_block_forward.1} parent=51 // pred_region
        %p306 = scmp.lt.s32.totalorder %s16, 1
        %s307 = scalar_select %p306, %s16, 1
        %s308 = smul.addr %s307, 2
        %s309 = smul.addr %s308, 4
        %s310 = scalar_lea.vmem %s0, %s309
      $region56: #{ca_block_forward.1} parent=51 // pred_fallthru
        _
    $region52: #{ca_block_forward.1} parent=5 // pred_fallthru
      _
    %p311 = scmp.le.s32.totalorder 1, %s16
    %p312 = scmp.lt.s32.totalorder %s16, 3
    %p313 = pnand %p311, %p312
    %p314 = pneg %p313
    // Predicated region
    $region57: #{ca_block_forward.1} parent=5 // pred_check
      _
    $region58: #{ca_block_forward.1} parent=5 // pred_check_branch
      %316 = sbr.rel (%p313) target = $region60
    $region59: #{ca_block_forward.1} parent=5 // pred_region
      %s317 = ssub.s32 %s16, 1
      %p318 = scmp.lt.s32.totalorder %s21, 1
      %s319 = scalar_select %p318, %s21, 1
      %s320 = smul.addr %s319, 2
      %s321 = smul.addr %s320, 4
      %s322 = scalar_lea.vmem %s0, %s321
      %p323 = pneg %p42
      %p324 = pneg %p39
      %p325 = pneg %p63
      %p326 = pneg %p60
      %p327 = pneg %p84
      %p328 = pneg %p81
      %p329 = pneg %p105
      %p330 = pneg %p102
      %p331 = pneg %p126
      %p332 = pneg %p123
      %p333 = pneg %p147
      %p334 = pneg %p144
      %p335 = pneg %p168
      %p336 = pneg %p165
      %p337 = pneg %p189
      %p338 = pneg %p186
      %p339 = pneg %p210
      %p340 = pneg %p207
      %p341 = pneg %p231
      %p342 = pneg %p228
      %p343 = pneg %p257
      %p344 = pneg %p254
      %p345 = scmp.lt.s32.totalorder %s21, 1
      %s346 = scalar_select %p345, %s21, 1
      %s347 = smul.addr %s346, 2
      %s348 = smul.addr %s347, 4
      %s349 = scalar_lea.vmem %s10, %s348
      %p350 = scmp.lt.s32.totalorder %s21, 1
      %s351 = scalar_select %p350, %s21, 1
      %s352 = smul.addr %s351, 2
      %s353 = smul.addr %s352, 4
      %s354 = scalar_lea.vmem %s0, %s353
      %p355 = scmp.lt.s32.totalorder %s21, 1
      %s356 = scalar_select %p355, %s21, 1
      %s357 = smul.addr %s356, 2
      %s358 = smul.addr %s357, 4
      %s359 = scalar_lea.vmem %s10, %s358
      %v360 = vld [vmem:[%s1] sm:$0xff]
      %v361 = vld [vmem:[%s1 + $0x8] sm:$0xff]
      %v362 = vld [vmem:[%s1 + $0x10] sm:$0xff]
      %v363 = vld [vmem:[%s1 + $0x18] sm:$0xff]
      %v364 = vld [vmem:[%s1 + $0x20] sm:$0xff]
      %v365 = vld [vmem:[%s1 + $0x28] sm:$0xff]
      %v366 = vld [vmem:[%s1 + $0x30] sm:$0xff]
      %v367 = vld [vmem:[%s1 + $0x38] sm:$0xff]
      %v368 = vld [vmem:[%s1 + $0x40] sm:$0xff]
      %v369 = vld [vmem:[%s1 + $0x48] sm:$0xff]
      %v370 = vld [vmem:[%s1 + $0x50] sm:$0xff]
      %v371 = vld [vmem:[%s1 + $0x58] sm:$0xff]
      %v372 = vld [vmem:[%s1 + $0x60] sm:$0xff]
      %v373 = vld [vmem:[%s1 + $0x68] sm:$0xff]
      %v374 = vld [vmem:[%s1 + $0x70] sm:$0xff]
      %v375 = vld [vmem:[%s1 + $0x78] sm:$0xff]
      %v376 = vld [vmem:[%s1 + $0x80] sm:$0xff]
      %v377 = vld [vmem:[%s1 + $0x88] sm:$0xff]
      %v378 = vld [vmem:[%s1 + $0x90] sm:$0xff]
      %v379 = vld [vmem:[%s1 + $0x98] sm:$0xff]
      %v380 = vld [vmem:[%s1 + $0xa0] sm:$0xff]
      %v381 = vld [vmem:[%s1 + $0xa8] sm:$0xff]
      %v382 = vld [vmem:[%s1 + $0xb0] sm:$0xff]
      %v383 = vld [vmem:[%s1 + $0xb8] sm:$0xff]
      %v384 = vld [vmem:[%s1 + $0xc0] sm:$0xff]
      %v385 = vld [vmem:[%s1 + $0xc8] sm:$0xff]
      %v386 = vld [vmem:[%s1 + $0xd0] sm:$0xff]
      %v387 = vld [vmem:[%s1 + $0xd8] sm:$0xff]
      %v388 = vld [vmem:[%s1 + $0xe0] sm:$0xff]
      %v389 = vld [vmem:[%s1 + $0xe8] sm:$0xff]
      %v390 = vld [vmem:[%s1 + $0xf0] sm:$0xff]
      %v391 = vld [vmem:[%s1 + $0xf8] sm:$0xff]
      %v392 = vld [vmem:[%s2] sm:$0xff]
      %v393 = vld [vmem:[%s2 + $0x8] sm:$0xff]
      %v394 = vld [vmem:[%s2 + $0x10] sm:$0xff]
      %v395 = vld [vmem:[%s2 + $0x18] sm:$0xff]
      %v396 = vld [vmem:[%s3] sm:$0xff]
      %v397 = vld [vmem:[%s3 + $0x8] sm:$0xff]
      %v398 = vld [vmem:[%s3 + $0x10] sm:$0xff]
      %v399 = vld [vmem:[%s3 + $0x18] sm:$0xff]
      %v400 = vld [vmem:[%s4] sm:$0xff]
      %v401 = vld [vmem:[%s5] sm:$0xff]
      %v402 = vld [vmem:[%s6] sm:$0xf]
      %v403 = vld [vmem:[%s7] sm:$0xf]
      %v404 = vld [vmem:[%s8] sm:$0xf]
      %v405 = vld [vmem:[%s9] sm:$0xf]
      %v406 = vld [vmem:[%s354] sm:$0xff]
      %v408 = vcombine.high %v406, %v406
      %410 = vmatprep.subr.mxu0 0.0
      %411 = vmatpush1.msra.mxu0 %v360
      %412 = vmatprep.subr.mxu0 0.0
      %413 = vmatpush1.msra.mxu0 %v361
      %414 = vmatprep.subr.mxu0 0.0
      %415 = vmatpush1.msra.mxu0 %v362
      %416 = vmatprep.subr.mxu0 0.0
      %417 = vmatpush1.msra.mxu0 %v363
      %418 = vmatprep.subr.mxu0 0.0
      %419 = vmatpush1.msra.mxu0 %v364
      %420 = vmatprep.subr.mxu0 0.0
      %421 = vmatpush1.msra.mxu0 %v365
      %422 = vmatprep.subr.mxu0 0.0
      %423 = vmatpush1.msra.mxu0 %v366
      %424 = vmatprep.subr.mxu0 0.0
      %425 = vmatpush1.msra.mxu0 %v367
      %426 = vmatprep.subr.mxu0 0.0
      %427 = vmatpush1.msra.mxu0 %v368
      %428 = vmatprep.subr.mxu0 0.0
      %429 = vmatpush1.msra.mxu0 %v369
      %430 = vmatprep.subr.mxu0 0.0
      %431 = vmatpush1.msra.mxu0 %v370
      %432 = vmatprep.subr.mxu0 0.0
      %433 = vmatpush1.msra.mxu0 %v371
      %434 = vmatprep.subr.mxu0 0.0
      %435 = vmatpush1.msra.mxu0 %v372
      %436 = vmatprep.subr.mxu0 0.0
      %437 = vmatpush1.msra.mxu0 %v373
      %438 = vmatprep.subr.mxu0 0.0
      %439 = vmatpush1.msra.mxu0 %v374
      %440 = vmatprep.subr.mxu0 0.0
      %441 = vmatpush1.msra.mxu0 %v375
      %442 = vmatprep.subr.mxu0 0.0
      %443 = vmatpush1.msra.mxu0 %v376
      %444 = vmatprep.subr.mxu0 0.0
      %445 = vmatpush1.msra.mxu0 %v377
      %446 = vmatprep.subr.mxu0 0.0
      %447 = vmatpush1.msra.mxu0 %v378
      %448 = vmatprep.subr.mxu0 0.0
      %449 = vmatpush1.msra.mxu0 %v379
      %450 = vmatprep.subr.mxu0 0.0
      %451 = vmatpush1.msra.mxu0 %v380
      %452 = vmatprep.subr.mxu0 0.0
      %453 = vmatpush1.msra.mxu0 %v381
      %454 = vmatprep.subr.mxu0 0.0
      %455 = vmatpush1.msra.mxu0 %v382
      %456 = vmatprep.subr.mxu0 0.0
      %457 = vmatpush1.msra.mxu0 %v383
      %458 = vmatprep.subr.mxu0 0.0
      %459 = vmatpush1.msra.mxu0 %v384
      %460 = vmatprep.subr.mxu0 0.0
      %461 = vmatpush1.msra.mxu0 %v385
      %462 = vmatprep.subr.mxu0 0.0
      %463 = vmatpush1.msra.mxu0 %v386
      %464 = vmatprep.subr.mxu0 0.0
      %465 = vmatpush1.msra.mxu0 %v387
      %466 = vmatprep.subr.mxu0 0.0
      %467 = vmatpush1.msra.mxu0 %v388
      %468 = vmatprep.subr.mxu0 0.0
      %469 = vmatpush1.msra.mxu0 %v389
      %470 = vmatprep.subr.mxu0 0.0
      %471 = vmatpush1.msra.mxu0 %v390
      %472 = vmatprep.subr.mxu0 0.0
      %473 = vmatpush1.msra.mxu0 %v391
      %474 = vmatprep.mubr.f32.mxu0 %v408
      %475 = vmatmul.mubr.f32.gmra.mrb[0].mxu0 %v406
      %v476 = vpop.f32.mrb[0].mxu0
      %v477 = vadd.f32 0.0, %v476
      %v478 = vpop.f32.mrb[0].mxu0
      %479 = vdwg.mxu0
      %481 = vset.pattern.permute.xlu0 0
      %482 = vperm.xlu0 %481, %v401
      %v483 = vpop.permute.xlu0 %482
      %vm485 = vcmask 31744
      %v487 = vsel %vm485, %v400, 0
      %vm489 = vcmask 1043456
      %v491 = vsel %vm489, %v477, 0
      %493 = vmatprep.subr.mxu0 0.0
      %494 = vmatpush1.msra.mxu0 %v491
      %495 = vmatprep.subr.mxu0 0.0
      %496 = vmatpush1.msra.mxu0 0.0
      %497 = vmatprep.subr.mxu0 0.0
      %498 = vmatpush1.msra.mxu0 0.0
      %499 = vmatprep.subr.mxu0 0.0
      %500 = vmatpush1.msra.mxu0 0.0
      %501 = vmatprep.subr.mxu0 0.0
      %502 = vmatpush1.msra.mxu0 0.0
      %503 = vmatprep.subr.mxu0 0.0
      %504 = vmatpush1.msra.mxu0 0.0
      %505 = vmatprep.subr.mxu0 0.0
      %506 = vmatpush1.msra.mxu0 0.0
      %507 = vmatprep.subr.mxu0 0.0
      %508 = vmatpush1.msra.mxu0 0.0
      %509 = vmatprep.subr.mxu0 0.0
      %510 = vmatpush1.msra.mxu0 0.0
      %511 = vmatprep.subr.mxu0 0.0
      %512 = vmatpush1.msra.mxu0 0.0
      %513 = vmatprep.subr.mxu0 0.0
      %514 = vmatpush1.msra.mxu0 0.0
      %515 = vmatprep.subr.mxu0 0.0
      %516 = vmatpush1.msra.mxu0 0.0
      %517 = vmatprep.subr.mxu0 0.0
      %518 = vmatpush1.msra.mxu0 0.0
      %519 = vmatprep.subr.mxu0 0.0
      %520 = vmatpush1.msra.mxu0 0.0
      %521 = vmatprep.subr.mxu0 0.0
      %522 = vmatpush1.msra.mxu0 0.0
      %523 = vmatprep.subr.mxu0 0.0
      %524 = vmatpush1.msra.mxu0 0.0
      %525 = vmatprep.subr.mxu0 0.0
      %526 = vmatpush1.msra.mxu0 0.0
      %527 = vmatprep.subr.mxu0 0.0
      %528 = vmatpush1.msra.mxu0 0.0
      %529 = vmatprep.subr.mxu0 0.0
      %530 = vmatpush1.msra.mxu0 0.0
      %531 = vmatprep.subr.mxu0 0.0
      %532 = vmatpush1.msra.mxu0 0.0
      %533 = vmatprep.subr.mxu0 0.0
      %534 = vmatpush1.msra.mxu0 0.0
      %535 = vmatprep.subr.mxu0 0.0
      %536 = vmatpush1.msra.mxu0 0.0
      %537 = vmatprep.subr.mxu0 0.0
      %538 = vmatpush1.msra.mxu0 0.0
      %539 = vmatprep.subr.mxu0 0.0
      %540 = vmatpush1.msra.mxu0 0.0
      %541 = vmatprep.subr.mxu0 0.0
      %542 = vmatpush1.msra.mxu0 0.0
      %543 = vmatprep.subr.mxu0 0.0
      %544 = vmatpush1.msra.mxu0 0.0
      %545 = vmatprep.subr.mxu0 0.0
      %546 = vmatpush1.msra.mxu0 0.0
      %547 = vmatprep.subr.mxu0 0.0
      %548 = vmatpush1.msra.mxu0 0.0
      %549 = vmatprep.subr.mxu0 0.0
      %550 = vmatpush1.msra.mxu0 0.0
      %551 = vmatprep.subr.mxu0 0.0
      %552 = vmatpush1.msra.mxu0 0.0
      %553 = vmatprep.subr.mxu0 0.0
      %554 = vmatpush1.msra.mxu0 0.0
      %555 = vmatprep.subr.mxu0 0.0
      %556 = vmatpush1.msra.mxu0 0.0
      %557 = vmatprep.mubr.f32.mxu0 0.0
      %558 = vmatmul.mubr.f32.gmra.mrb[0].mxu0 %v487
      %v559 = vpop.f32.mrb[0].mxu0
      %v560 = vadd.f32 %v483, %v559
      %v561 = vpop.f32.mrb[0].mxu0
      %562 = vdwg.mxu0
      %v563 = vadd.f32 %v560, 3.0
      %v564 = vmax.f32 %v563, 0.0
      %v565 = vmin.f32 %v564, 6.0
      %v566 = vmul.f32 %v565, 0.16666667
      %v567 = vmul.f32 %v560, %v566
      %569 = vset.pattern.permute.xlu0 0
      %570 = vperm.xlu0 %569, %v403
      %v571 = vpop.permute.xlu0 %570
      %vm573 = vcmask 64512
      %v575 = vsel %vm573, %v402, 0
      %577 = vmatprep.subr.mxu0 0.0
      %578 = vmatpush1.msra.mxu0 %v567
      %579 = vmatprep.subr.mxu0 0.0
      %580 = vmatpush1.msra.mxu0 0.0
      %581 = vmatprep.subr.mxu0 0.0
      %582 = vmatpush1.msra.mxu0 0.0
      %583 = vmatprep.subr.mxu0 0.0
      %584 = vmatpush1.msra.mxu0 0.0
      %585 = vmatprep.subr.mxu0 0.0
      %586 = vmatpush1.msra.mxu0 0.0
      %587 = vmatprep.subr.mxu0 0.0
      %588 = vmatpush1.msra.mxu0 0.0
      %589 = vmatprep.subr.mxu0 0.0
      %590 = vmatpush1.msra.mxu0 0.0
      %591 = vmatprep.subr.mxu0 0.0
      %592 = vmatpush1.msra.mxu0 0.0
      %593 = vmatprep.subr.mxu0 0.0
      %594 = vmatpush1.msra.mxu0 0.0
      %595 = vmatprep.subr.mxu0 0.0
      %596 = vmatpush1.msra.mxu0 0.0
      %597 = vmatprep.subr.mxu0 0.0
      %598 = vmatpush1.msra.mxu0 0.0
      %599 = vmatprep.subr.mxu0 0.0
      %600 = vmatpush1.msra.mxu0 0.0
      %601 = vmatprep.subr.mxu0 0.0
      %602 = vmatpush1.msra.mxu0 0.0
      %603 = vmatprep.subr.mxu0 0.0
      %604 = vmatpush1.msra.mxu0 0.0
      %605 = vmatprep.subr.mxu0 0.0
      %606 = vmatpush1.msra.mxu0 0.0
      %607 = vmatprep.subr.mxu0 0.0
      %608 = vmatpush1.msra.mxu0 0.0
      %609 = vmatprep.subr.mxu0 0.0
      %610 = vmatpush1.msra.mxu0 0.0
      %611 = vmatprep.subr.mxu0 0.0
      %612 = vmatpush1.msra.mxu0 0.0
      %613 = vmatprep.subr.mxu0 0.0
      %614 = vmatpush1.msra.mxu0 0.0
      %615 = vmatprep.subr.mxu0 0.0
      %616 = vmatpush1.msra.mxu0 0.0
      %617 = vmatprep.subr.mxu0 0.0
      %618 = vmatpush1.msra.mxu0 0.0
      %619 = vmatprep.subr.mxu0 0.0
      %620 = vmatpush1.msra.mxu0 0.0
      %621 = vmatprep.subr.mxu0 0.0
      %622 = vmatpush1.msra.mxu0 0.0
      %623 = vmatprep.subr.mxu0 0.0
      %624 = vmatpush1.msra.mxu0 0.0
      %625 = vmatprep.subr.mxu0 0.0
      %626 = vmatpush1.msra.mxu0 0.0
      %627 = vmatprep.subr.mxu0 0.0
      %628 = vmatpush1.msra.mxu0 0.0
      %629 = vmatprep.subr.mxu0 0.0
      %630 = vmatpush1.msra.mxu0 0.0
      %631 = vmatprep.subr.mxu0 0.0
      %632 = vmatpush1.msra.mxu0 0.0
      %633 = vmatprep.subr.mxu0 0.0
      %634 = vmatpush1.msra.mxu0 0.0
      %635 = vmatprep.subr.mxu0 0.0
      %636 = vmatpush1.msra.mxu0 0.0
      %637 = vmatprep.subr.mxu0 0.0
      %638 = vmatpush1.msra.mxu0 0.0
      %639 = vmatprep.subr.mxu0 0.0
      %640 = vmatpush1.msra.mxu0 0.0
      %641 = vmatprep.mubr.f32.mxu0 0.0
      %642 = vmatmul.mubr.f32.gmra.mrb[0].mxu0 %v575
      %v643 = vpop.f32.mrb[0].mxu0
      %v644 = vadd.f32 %v571, %v643
      %v645 = vpop.f32.mrb[0].mxu0
      %646 = vdwg.mxu0
      %v647 = vxor.u32 %v644, 2147483648
      %v648 = vmul.f32 %v647, 1.442695
      %v649 = vpow.pop %v648
      %v650 = vadd.f32 %v649, 1.0
      %v651 = vrcp.pop %v650
      %v652 = vmul.f32 1.0, %v651
      %654 = vset.pattern.permute.xlu0 0
      %655 = vperm.xlu0 %654, %v405
      %v656 = vpop.permute.xlu0 %655
      %659 = vrot.lane.b32.xlu0 %v567, 112
      %v660 = vpop.permute.xlu0 %659
      %v663 = vsel %vm573, %v404, 0
      %665 = vmatprep.subr.mxu0 0.0
      %666 = vmatpush1.msra.mxu0 %v660
      %667 = vmatprep.subr.mxu0 0.0
      %668 = vmatpush1.msra.mxu0 0.0
      %669 = vmatprep.subr.mxu0 0.0
      %670 = vmatpush1.msra.mxu0 0.0
      %671 = vmatprep.subr.mxu0 0.0
      %672 = vmatpush1.msra.mxu0 0.0
      %673 = vmatprep.subr.mxu0 0.0
      %674 = vmatpush1.msra.mxu0 0.0
      %675 = vmatprep.subr.mxu0 0.0
      %676 = vmatpush1.msra.mxu0 0.0
      %677 = vmatprep.subr.mxu0 0.0
      %678 = vmatpush1.msra.mxu0 0.0
      %679 = vmatprep.subr.mxu0 0.0
      %680 = vmatpush1.msra.mxu0 0.0
      %681 = vmatprep.subr.mxu0 0.0
      %682 = vmatpush1.msra.mxu0 0.0
      %683 = vmatprep.subr.mxu0 0.0
      %684 = vmatpush1.msra.mxu0 0.0
      %685 = vmatprep.subr.mxu0 0.0
      %686 = vmatpush1.msra.mxu0 0.0
      %687 = vmatprep.subr.mxu0 0.0
      %688 = vmatpush1.msra.mxu0 0.0
      %689 = vmatprep.subr.mxu0 0.0
      %690 = vmatpush1.msra.mxu0 0.0
      %691 = vmatprep.subr.mxu0 0.0
      %692 = vmatpush1.msra.mxu0 0.0
      %693 = vmatprep.subr.mxu0 0.0
      %694 = vmatpush1.msra.mxu0 0.0
      %695 = vmatprep.subr.mxu0 0.0
      %696 = vmatpush1.msra.mxu0 0.0
      %697 = vmatprep.subr.mxu0 0.0
      %698 = vmatpush1.msra.mxu0 0.0
      %699 = vmatprep.subr.mxu0 0.0
      %700 = vmatpush1.msra.mxu0 0.0
      %701 = vmatprep.subr.mxu0 0.0
      %702 = vmatpush1.msra.mxu0 0.0
      %703 = vmatprep.subr.mxu0 0.0
      %704 = vmatpush1.msra.mxu0 0.0
      %705 = vmatprep.subr.mxu0 0.0
      %706 = vmatpush1.msra.mxu0 0.0
      %707 = vmatprep.subr.mxu0 0.0
      %708 = vmatpush1.msra.mxu0 0.0
      %709 = vmatprep.subr.mxu0 0.0
      %710 = vmatpush1.msra.mxu0 0.0
      %711 = vmatprep.subr.mxu0 0.0
      %712 = vmatpush1.msra.mxu0 0.0
      %713 = vmatprep.subr.mxu0 0.0
      %714 = vmatpush1.msra.mxu0 0.0
      %715 = vmatprep.subr.mxu0 0.0
      %716 = vmatpush1.msra.mxu0 0.0
      %717 = vmatprep.subr.mxu0 0.0
      %718 = vmatpush1.msra.mxu0 0.0
      %719 = vmatprep.subr.mxu0 0.0
      %720 = vmatpush1.msra.mxu0 0.0
      %721 = vmatprep.subr.mxu0 0.0
      %722 = vmatpush1.msra.mxu0 0.0
      %723 = vmatprep.subr.mxu0 0.0
      %724 = vmatpush1.msra.mxu0 0.0
      %725 = vmatprep.subr.mxu0 0.0
      %726 = vmatpush1.msra.mxu0 0.0
      %727 = vmatprep.subr.mxu0 0.0
      %728 = vmatpush1.msra.mxu0 0.0
      %729 = vmatprep.mubr.f32.mxu0 0.0
      %730 = vmatmul.mubr.f32.gmra.mrb[0].mxu0 %v663
      %v731 = vpop.f32.mrb[0].mxu0
      %v732 = vadd.f32 %v656, %v731
      %v733 = vpop.f32.mrb[0].mxu0
      %734 = vdwg.mxu0
      %v735 = vxor.u32 %v732, 2147483648
      %v736 = vmul.f32 %v735, 1.442695
      %v737 = vpow.pop %v736
      %v738 = vadd.f32 %v737, 1.0
      %v739 = vrcp.pop %v738
      %v740 = vmul.f32 1.0, %v739
      %vm741 = vcmask 130048
      %v743 = vsel %vm741, %v652, 0
      %745 = vmatprep.subr.mxu0 %v393
      %746 = vmatpush1.msra.mxu0 %v392
      %747 = vmatprep.subr.mxu0 %v395
      %748 = vmatpush1.msra.mxu0 %v394
      %749 = vmatprep.subr.mxu0 0.0
      %750 = vmatpush1.msra.mxu0 0.0
      %751 = vmatprep.subr.mxu0 0.0
      %752 = vmatpush1.msra.mxu0 0.0
      %753 = vmatprep.subr.mxu0 0.0
      %754 = vmatpush1.msra.mxu0 0.0
      %755 = vmatprep.subr.mxu0 0.0
      %756 = vmatpush1.msra.mxu0 0.0
      %757 = vmatprep.subr.mxu0 0.0
      %758 = vmatpush1.msra.mxu0 0.0
      %759 = vmatprep.subr.mxu0 0.0
      %760 = vmatpush1.msra.mxu0 0.0
      %761 = vmatprep.subr.mxu0 0.0
      %762 = vmatpush1.msra.mxu0 0.0
      %763 = vmatprep.subr.mxu0 0.0
      %764 = vmatpush1.msra.mxu0 0.0
      %765 = vmatprep.subr.mxu0 0.0
      %766 = vmatpush1.msra.mxu0 0.0
      %767 = vmatprep.subr.mxu0 0.0
      %768 = vmatpush1.msra.mxu0 0.0
      %769 = vmatprep.subr.mxu0 0.0
      %770 = vmatpush1.msra.mxu0 0.0
      %771 = vmatprep.subr.mxu0 0.0
      %772 = vmatpush1.msra.mxu0 0.0
      %773 = vmatprep.subr.mxu0 0.0
      %774 = vmatpush1.msra.mxu0 0.0
      %775 = vmatprep.subr.mxu0 0.0
      %776 = vmatpush1.msra.mxu0 0.0
      %777 = vmatprep.subr.mxu0 0.0
      %778 = vmatpush1.msra.mxu0 0.0
      %779 = vmatprep.subr.mxu0 0.0
      %780 = vmatpush1.msra.mxu0 0.0
      %781 = vmatprep.subr.mxu0 0.0
      %782 = vmatpush1.msra.mxu0 0.0
      %783 = vmatprep.subr.mxu0 0.0
      %784 = vmatpush1.msra.mxu0 0.0
      %785 = vmatprep.subr.mxu0 0.0
      %786 = vmatpush1.msra.mxu0 0.0
      %787 = vmatprep.subr.mxu0 0.0
      %788 = vmatpush1.msra.mxu0 0.0
      %789 = vmatprep.subr.mxu0 0.0
      %790 = vmatpush1.msra.mxu0 0.0
      %791 = vmatprep.subr.mxu0 0.0
      %792 = vmatpush1.msra.mxu0 0.0
      %793 = vmatprep.subr.mxu0 0.0
      %794 = vmatpush1.msra.mxu0 0.0
      %795 = vmatprep.subr.mxu0 0.0
      %796 = vmatpush1.msra.mxu0 0.0
      %797 = vmatprep.subr.mxu0 0.0
      %798 = vmatpush1.msra.mxu0 0.0
      %799 = vmatprep.subr.mxu0 0.0
      %800 = vmatpush1.msra.mxu0 0.0
      %801 = vmatprep.subr.mxu0 0.0
      %802 = vmatpush1.msra.mxu0 0.0
      %803 = vmatprep.subr.mxu0 0.0
      %804 = vmatpush1.msra.mxu0 0.0
      %805 = vmatprep.subr.mxu0 0.0
      %806 = vmatpush1.msra.mxu0 0.0
      %807 = vmatprep.subr.mxu0 0.0
      %808 = vmatpush1.msra.mxu0 0.0
      %809 = vmatprep.mubr.f32.mxu0 0.0
      %810 = vmatmul.mubr.f32.gmra.mrb[0].mxu0 %v743
      %v811 = vpop.f32.mrb[0].mxu0
      %v812 = vadd.f32 0.0, %v811
      %v813 = vpop.f32.mrb[0].mxu0
      %v814 = vadd.f32 0.0, %v813
      %815 = vdwg.mxu0
      %v817 = vsel %vm741, %v740, 0
      %819 = vmatprep.subr.mxu0 %v397
      %820 = vmatpush1.msra.mxu0 %v396
      %821 = vmatprep.subr.mxu0 %v399
      %822 = vmatpush1.msra.mxu0 %v398
      %823 = vmatprep.subr.mxu0 0.0
      %824 = vmatpush1.msra.mxu0 0.0
      %825 = vmatprep.subr.mxu0 0.0
      %826 = vmatpush1.msra.mxu0 0.0
      %827 = vmatprep.subr.mxu0 0.0
      %828 = vmatpush1.msra.mxu0 0.0
      %829 = vmatprep.subr.mxu0 0.0
      %830 = vmatpush1.msra.mxu0 0.0
      %831 = vmatprep.subr.mxu0 0.0
      %832 = vmatpush1.msra.mxu0 0.0
      %833 = vmatprep.subr.mxu0 0.0
      %834 = vmatpush1.msra.mxu0 0.0
      %835 = vmatprep.subr.mxu0 0.0
      %836 = vmatpush1.msra.mxu0 0.0
      %837 = vmatprep.subr.mxu0 0.0
      %838 = vmatpush1.msra.mxu0 0.0
      %839 = vmatprep.subr.mxu0 0.0
      %840 = vmatpush1.msra.mxu0 0.0
      %841 = vmatprep.subr.mxu0 0.0
      %842 = vmatpush1.msra.mxu0 0.0
      %843 = vmatprep.subr.mxu0 0.0
      %844 = vmatpush1.msra.mxu0 0.0
      %845 = vmatprep.subr.mxu0 0.0
      %846 = vmatpush1.msra.mxu0 0.0
      %847 = vmatprep.subr.mxu0 0.0
      %848 = vmatpush1.msra.mxu0 0.0
      %849 = vmatprep.subr.mxu0 0.0
      %850 = vmatpush1.msra.mxu0 0.0
      %851 = vmatprep.subr.mxu0 0.0
      %852 = vmatpush1.msra.mxu0 0.0
      %853 = vmatprep.subr.mxu0 0.0
      %854 = vmatpush1.msra.mxu0 0.0
      %855 = vmatprep.subr.mxu0 0.0
      %856 = vmatpush1.msra.mxu0 0.0
      %857 = vmatprep.subr.mxu0 0.0
      %858 = vmatpush1.msra.mxu0 0.0
      %859 = vmatprep.subr.mxu0 0.0
      %860 = vmatpush1.msra.mxu0 0.0
      %861 = vmatprep.subr.mxu0 0.0
      %862 = vmatpush1.msra.mxu0 0.0
      %863 = vmatprep.subr.mxu0 0.0
      %864 = vmatpush1.msra.mxu0 0.0
      %865 = vmatprep.subr.mxu0 0.0
      %866 = vmatpush1.msra.mxu0 0.0
      %867 = vmatprep.subr.mxu0 0.0
      %868 = vmatpush1.msra.mxu0 0.0
      %869 = vmatprep.subr.mxu0 0.0
      %870 = vmatpush1.msra.mxu0 0.0
      %871 = vmatprep.subr.mxu0 0.0
      %872 = vmatpush1.msra.mxu0 0.0
      %873 = vmatprep.subr.mxu0 0.0
      %874 = vmatpush1.msra.mxu0 0.0
      %875 = vmatprep.subr.mxu0 0.0
      %876 = vmatpush1.msra.mxu0 0.0
      %877 = vmatprep.subr.mxu0 0.0
      %878 = vmatpush1.msra.mxu0 0.0
      %879 = vmatprep.subr.mxu0 0.0
      %880 = vmatpush1.msra.mxu0 0.0
      %881 = vmatprep.subr.mxu0 0.0
      %882 = vmatpush1.msra.mxu0 0.0
      %883 = vmatprep.mubr.f32.mxu0 0.0
      %884 = vmatmul.mubr.f32.gmra.mrb[0].mxu0 %v817
      %v885 = vpop.f32.mrb[0].mxu0
      %v886 = vadd.f32 0.0, %v885
      %v887 = vpop.f32.mrb[0].mxu0
      %v888 = vadd.f32 0.0, %v887
      %889 = vdwg.mxu0
      %v892 = vcombine.low %v812, %v814
      %v894 = vmul.f32 %v406, %v892
      %v897 = vcombine.low %v886, %v888
      %v899 = vmul.f32 %v894, %v897
      %900 = vst [vmem:[%s359] sm:$0xff] %v899
      %p901 = scmp.lt.s32.totalorder %s21, 1
      %s902 = scalar_select %p901, %s21, 1
      %s903 = smul.addr %s902, 2
      %s904 = smul.addr %s903, 4
      %s905 = scalar_lea.vmem %s10, %s904
      // Predicated region
      $region61: #{ca_block_forward.1} parent=59 // pred_check
        %p906 = pneg %p254
      $region62: #{ca_block_forward.1} parent=59 // pred_check_branch
        %908 = sbr.rel (%p906) target = $region64
      $region63: #{ca_block_forward.1} parent=59 // pred_region
        _
      $region64: #{ca_block_forward.1} parent=59 // pred_fallthru
        _
    $region60: #{ca_block_forward.1} parent=5 // pred_fallthru
      _
    %p909 = scmp.le.s32.totalorder 2, %s16
    // Predicated region
    $region65: #{ca_block_forward.1} parent=5 // pred_check
      %p910 = pneg %p909
    $region66: #{ca_block_forward.1} parent=5 // pred_check_branch
      %912 = sbr.rel (%p910) target = $region68
    $region67: #{ca_block_forward.1} parent=5 // pred_region
      %s913 = ssub.s32 %s16, 2
      // Predicated region
      $region69: #{ca_block_forward.1} parent=67 // pred_check
        %p914 = pneg %p260
      $region70: #{ca_block_forward.1} parent=67 // pred_check_branch
        %916 = sbr.rel (%p914) target = $region72
      $region71: #{ca_block_forward.1} parent=67 // pred_region
        %p917 = scmp.lt.s32.totalorder %s22, 1
        %s918 = scalar_select %p917, %s22, 1
        %s919 = smul.addr %s918, 2
        %s920 = smul.addr %s919, 4
        %s921 = scalar_lea.vmem %s10, %s920
      $region72: #{ca_block_forward.1} parent=67 // pred_fallthru
        _
    $region68: #{ca_block_forward.1} parent=5 // pred_fallthru
      _
  $region6: #{ca_block_forward.1} parent=0 // loop_footer
    %s20 = sadd.s32 1, %s16
  $region7: #{ca_block_forward.1} parent=0 // loop_footer_branch
    %15 = sbr.rel target = $region3
  $region8: #{ca_block_forward.1} parent=0 // loop_exit
    _

</llo_original>
